<compile_context>
chip_gen: v7x
topology: tpu7x:2x2x1
jax: 0.10.0
libtpu: 0.0.40
codegen_flags: <defaults>
</compile_context>

<pallas_src>
import jax
import jax.numpy as jnp
from jax.experimental import pallas as pl
from jax.experimental.pallas import tpu as pltpu


_MXU_MIN_K = 16  # 1x1 convs with >= this many input channels go to the MXU


# --------------------------------------------------------------------------
# Helpers
# --------------------------------------------------------------------------
def _pick_tile(total, target, quantum):
    """Largest multiple of `quantum` dividing `total` and <= target; else `total`."""
    if total <= target or total % quantum != 0:
        return total
    best = None
    t = quantum
    while t <= target:
        if total % t == 0:
            best = t
        t += quantum
    return best if best is not None else total


def _conv1x1(x_cs, w_oc):
    """1x1 conv over channels.  x_cs: (Cin, S), w_oc: (Cout, Cin) -> (Cout, S) f32."""
    cout, cin = w_oc.shape
    if cin >= _MXU_MIN_K:
        return jnp.dot(w_oc, x_cs, preferred_element_type=jnp.float32)
    # Tiny K: unrolled VPU broadcast multiply-adds, no MXU fill/drain overhead.
    acc = w_oc[:, 0:1] * x_cs[0:1, :]
    for c in range(1, cin):
        acc = acc + w_oc[:, c:c + 1] * x_cs[c:c + 1, :]
    return acc


def _channel_stats(tf):
    """tf: (C, S) f32 -> per-channel (sum, sum of squares), each (C, 1)."""
    return (jnp.sum(tf, axis=1, keepdims=True),
            jnp.sum(tf * tf, axis=1, keepdims=True))


# --------------------------------------------------------------------------
# Stage 1: 1x1 expansion conv + BN1 partial statistics
# --------------------------------------------------------------------------
def _expand_kernel(x_ref, w_ref, t_ref, s_ref, q_ref):
    x = x_ref[0].astype(jnp.float32)                    # (Cin, s_blk)
    t = _conv1x1(x, w_ref[...])                         # (hid, s_blk) f32
    tq = t.astype(t_ref.dtype)                          # bf16 (or f32) to HBM
    t_ref[0] = tq
    s, q = _channel_stats(tq.astype(jnp.float32))       # stats on the rounded tensor
    s_ref[0, 0] = s
    q_ref[0, 0] = q


# --------------------------------------------------------------------------
# Stage 2: (BN1 + ReLU6) -> depthwise 3x3 (stride 1) via lane rolls + BN2 stats
# --------------------------------------------------------------------------
def _make_dw_kernel(pre_act, H, W):
    S = H * W

    def _dw(a, w9, m):
        # a: (c, S) f32, w9: (c, 9) f32, m: (4, S) f32 boundary masks
        #   m[0]: col >= 1     (reading j-1 is in-bounds)
        #   m[1]: col <= W-2   (reading j+1 is in-bounds)
        #   m[2]: row >= 1     (reading i-1 is in-bounds)
        #   m[3]: row <= H-2   (reading i+1 is in-bounds)
        m_r, m_l, m_t, m_b = m[0:1, :], m[1:2, :], m[2:3, :], m[3:4, :]
        a_r = pltpu.roll(a, 1, axis=1) * m_r          # in[i, j-1]
        a_l = pltpu.roll(a, S - 1, axis=1) * m_l      # in[i, j+1]

        def row_taps(k):                              # k = kernel row index 0..2
            return (w9[:, 3 * k + 0:3 * k + 1] * a_r
                    + w9[:, 3 * k + 1:3 * k + 2] * a
                    + w9[:, 3 * k + 2:3 * k + 3] * a_l)

        out = row_taps(1)                                               # row i
        out = out + m_t * pltpu.roll(row_taps(0), W, axis=1)            # row i-1
        out = out + m_b * pltpu.roll(row_taps(2), S - W, axis=1)        # row i+1
        return out

    def _finish(out, t_ref, s_ref, q_ref):
        tq = out.astype(t_ref.dtype)
        t_ref[0] = tq
        s, q = _channel_stats(tq.astype(jnp.float32))
        s_ref[0] = s
        q_ref[0] = q

    if pre_act:
        def kern(a_ref, w_ref, m_ref, sc_ref, sh_ref, t_ref, s_ref, q_ref):
            a = a_ref[0].astype(jnp.float32)                            # (c, S)
            a = jnp.clip(a * sc_ref[...] + sh_ref[...], 0.0, 6.0)       # BN1+ReLU6
            _finish(_dw(a, w_ref[...], m_ref[...]), t_ref, s_ref, q_ref)
    else:
        def kern(a_ref, w_ref, m_ref, t_ref, s_ref, q_ref):
            a = a_ref[0].astype(jnp.float32)
            _finish(_dw(a, w_ref[...], m_ref[...]), t_ref, s_ref, q_ref)
    return kern


# --------------------------------------------------------------------------
# Stage 3: BN2 + ReLU6 -> 1x1 projection conv + BN3 partial statistics
# --------------------------------------------------------------------------
def _proj_kernel(a_ref, w_ref, sc_ref, sh_ref, t_ref, s_ref, q_ref):
    a = a_ref[0].astype(jnp.float32)                            # (hid, s_blk)
    a = jnp.clip(a * sc_ref[...] + sh_ref[...], 0.0, 6.0)       # BN2 + ReLU6
    t = _conv1x1(a, w_ref[...])                                 # (Cout, s_blk)
    tq = t.astype(t_ref.dtype)
    t_ref[0] = tq
    s, q = _channel_stats(tq.astype(jnp.float32))
    s_ref[0, 0] = s
    q_ref[0, 0] = q


# --------------------------------------------------------------------------
# Stage 4: BN3 (+ residual shortcut)
# --------------------------------------------------------------------------
def _make_final_kernel(shortcut):
    if shortcut:
        def kern(t_ref, sc_ref, sh_ref, x_ref, o_ref):
            y = (t_ref[0].astype(jnp.float32) * sc_ref[...] + sh_ref[...]
                 + x_ref[0].astype(jnp.float32))
            o_ref[0] = y.astype(o_ref.dtype)
    else:
        def kern(t_ref, sc_ref, sh_ref, o_ref):
            y = t_ref[0].astype(jnp.float32) * sc_ref[...] + sh_ref[...]
            o_ref[0] = y.astype(o_ref.dtype)
    return kern


# --------------------------------------------------------------------------
# Wrapper
# --------------------------------------------------------------------------
def _bn_fold(psum, psumsq, gamma, beta, count, eps=1e-5):
    """Fold per-tile partial sums into per-channel BN scale/shift (O(C) work)."""
    red = tuple(range(psum.ndim - 2))
    s = jnp.sum(psum, axis=red)                      # (C, 1)
    q = jnp.sum(psumsq, axis=red)                    # (C, 1)
    mu = s / count
    var = jnp.maximum(q / count - mu * mu, 0.0)      # guard f32 cancellation
    scale = gamma.reshape(-1, 1).astype(jnp.float32) / jnp.sqrt(var + eps)
    shift = beta.reshape(-1, 1).astype(jnp.float32) - mu * scale
    return scale, shift


def inverted_residual_forward(x_nchw, params, *, stride=1, expand_ratio=1,
                              act_dtype=jnp.bfloat16,
                              s_tile_target=2048, c_tile_target=128):
    if stride != 1:
        # TODO(synk): stride > 1 depthwise is not implemented in the Pallas path.
        raise NotImplementedError("stride > 1 not supported by the Pallas path")

    f32 = jnp.float32
    B, cin, H, W = x_nchw.shape
    S = H * W

    w_dw = params["w_dw"].reshape(-1, 3, 3).astype(f32)          # (hid, 3, 3)
    hid = w_dw.shape[0]
    w_dw9 = w_dw.reshape(hid, 9)                                  # one tile per step
    w_pj = params["w_proj"].reshape(params["w_proj"].shape[0], hid).astype(f32)
    cout = w_pj.shape[0]
    use_shortcut = (stride == 1) and (cin == cout)
    count = float(B * S)                                          # BN count over (N,H,W)

    s_blk = _pick_tile(S, s_tile_target, 128)                     # lane-axis tile
    c_blk = _pick_tile(hid, c_tile_target, 8)                     # dw channel tile
    nS = S // s_blk
    nC = hid // c_blk

    cp = pltpu.CompilerParams(dimension_semantics=("parallel", "parallel"),
                              vmem_limit_bytes=32 * 1024 * 1024)

    x2 = x_nchw.reshape(B, cin, S)   # free reshape: H*W becomes the lane axis

    # Depthwise boundary masks (4, S), precomputed once in the wrapper (tiny and
    # re-used by every grid step; keeps integer div/mod out of the kernel).
    idx = jnp.arange(S, dtype=jnp.int32)
    col = idx % W
    row = idx // W
    masks = jnp.stack([(col >= 1), (col <= W - 2),
                       (row >= 1), (row <= H - 2)], axis=0).astype(f32)

    # ---- stage 1: 1x1 expansion conv -----------------------------------------
    if expand_ratio != 1:
        w_exp = params["w_exp"].reshape(hid, cin).astype(f32)
        t1, s1, q1 = pl.pallas_call(
            _expand_kernel,
            out_shape=(jax.ShapeDtypeStruct((B, hid, S), act_dtype),
                       jax.ShapeDtypeStruct((B, nS, hid, 1), f32),
                       jax.ShapeDtypeStruct((B, nS, hid, 1), f32)),
            grid=(B, nS),
            in_specs=[pl.BlockSpec((1, cin, s_blk), lambda b, s: (b, 0, s)),
                      pl.BlockSpec((hid, cin), lambda b, s: (0, 0))],
            out_specs=(pl.BlockSpec((1, hid, s_blk), lambda b, s: (b, 0, s)),
                       pl.BlockSpec((1, 1, hid, 1), lambda b, s: (b, s, 0, 0)),
                       pl.BlockSpec((1, 1, hid, 1), lambda b, s: (b, s, 0, 0))),
            compiler_params=cp,
        )(x2, w_exp)
        sc1, sh1 = _bn_fold(s1, q1, params["gamma1"], params["beta1"], count)
        dw_in = t1
    else:
        dw_in = x2                                   # hid == cin, no expansion stage

    # ---- stage 2: (BN1+ReLU6) -> depthwise 3x3 (roll-based, lane-dense) -------
    dw_kernel = _make_dw_kernel(pre_act=(expand_ratio != 1), H=H, W=W)
    dw_out_shape = (jax.ShapeDtypeStruct((B, hid, S), act_dtype),
                    jax.ShapeDtypeStruct((B, hid, 1), f32),
                    jax.ShapeDtypeStruct((B, hid, 1), f32))
    dw_out_specs = (pl.BlockSpec((1, c_blk, S), lambda b, c: (b, c, 0)),
                    pl.BlockSpec((1, c_blk, 1), lambda b, c: (b, c, 0)),
                    pl.BlockSpec((1, c_blk, 1), lambda b, c: (b, c, 0)))
    dw_in_specs = [pl.BlockSpec((1, c_blk, S), lambda b, c: (b, c, 0)),
                   pl.BlockSpec((c_blk, 9), lambda b, c: (c, 0)),
                   pl.BlockSpec((4, S), lambda b, c: (0, 0))]
    dw_args = [dw_in, w_dw9, masks]
    if expand_ratio != 1:
        dw_in_specs += [pl.BlockSpec((c_blk, 1), lambda b, c: (c, 0)),
                        pl.BlockSpec((c_blk, 1), lambda b, c: (c, 0))]
        dw_args += [sc1, sh1]
    t2, s2, q2 = pl.pallas_call(
        dw_kernel, out_shape=dw_out_shape, grid=(B, nC),
        in_specs=dw_in_specs, out_specs=dw_out_specs,
        compiler_params=cp,
    )(*dw_args)
    sc2, sh2 = _bn_fold(s2, q2, params["gamma2"], params["beta2"], count)

    # ---- stage 3: BN2+ReLU6 -> 1x1 projection conv -----------------------------
    t3, s3, q3 = pl.pallas_call(
        _proj_kernel,
        out_shape=(jax.ShapeDtypeStruct((B, cout, S), act_dtype),
                   jax.ShapeDtypeStruct((B, nS, cout, 1), f32),
                   jax.ShapeDtypeStruct((B, nS, cout, 1), f32)),
        grid=(B, nS),
        in_specs=[pl.BlockSpec((1, hid, s_blk), lambda b, s: (b, 0, s)),
                  pl.BlockSpec((cout, hid), lambda b, s: (0, 0)),
                  pl.BlockSpec((hid, 1), lambda b, s: (0, 0)),
                  pl.BlockSpec((hid, 1), lambda b, s: (0, 0))],
        out_specs=(pl.BlockSpec((1, cout, s_blk), lambda b, s: (b, 0, s)),
                   pl.BlockSpec((1, 1, cout, 1), lambda b, s: (b, s, 0, 0)),
                   pl.BlockSpec((1, 1, cout, 1), lambda b, s: (b, s, 0, 0))),
        compiler_params=cp,
    )(t2, w_pj, sc2, sh2)
    sc3, sh3 = _bn_fold(s3, q3, params["gamma3"], params["beta3"], count)

    # ---- stage 4: BN3 (+ residual shortcut) ------------------------------------
    final_kernel = _make_final_kernel(use_shortcut)
    in_specs = [pl.BlockSpec((1, cout, s_blk), lambda b, s: (b, 0, s)),
                pl.BlockSpec((cout, 1), lambda b, s: (0, 0)),
                pl.BlockSpec((cout, 1), lambda b, s: (0, 0))]
    operands = [t3, sc3, sh3]
    if use_shortcut:
        in_specs.append(pl.BlockSpec((1, cout, s_blk), lambda b, s: (b, 0, s)))
        operands.append(x2)
    out2 = pl.pallas_call(
        final_kernel,
        out_shape=jax.ShapeDtypeStruct((B, cout, S), x_nchw.dtype),
        grid=(B, nS),
        in_specs=in_specs,
        out_specs=pl.BlockSpec((1, cout, s_blk), lambda b, s: (b, 0, s)),
        compiler_params=cp,
    )(*operands)

    return out2.reshape(B, cout, H, W)


# --------------------------------------------------------------------------
# Pure-JAX reference (mirrors the PyTorch forward, training-mode BN)
# --------------------------------------------------------------------------
def inverted_residual_reference(x, params, *, stride, expand_ratio):
    eps = 1e-5

    def bn_train(y, gamma, beta):
        mu = jnp.mean(y, axis=(0, 2, 3), keepdims=True)
        var = jnp.mean((y - mu) ** 2, axis=(0, 2, 3), keepdims=True)
        yn = (y - mu) / jnp.sqrt(var + eps)
        return yn * gamma[None, :, None, None] + beta[None, :, None, None]

    def conv(y, w, s, groups, pad):
        return jax.lax.conv_general_dilated(
            y, w, (s, s), ((pad, pad), (pad, pad)),
            dimension_numbers=("NCHW", "OIHW", "NCHW"),
            feature_group_count=groups)

    out = x
    if expand_ratio != 1:
        out = conv(out, params["w_exp"], 1, 1, 0)
        out = jnp.clip(bn_train(out, params["gamma1"], params["beta1"]), 0.0, 6.0)
    hid = params["w_dw"].shape[0]
    out = conv(out, params["w_dw"], stride, hid, 1)
    out = jnp.clip(bn_train(out, params["gamma2"], params["beta2"]), 0.0, 6.0)
    out = conv(out, params["w_proj"], 1, 1, 0)
    out = bn_train(out, params["gamma3"], params["beta3"])
    if stride == 1 and x.shape[1] == params["w_proj"].shape[0]:
        out = x + out
    return out


if __name__ == "__main__":
    key = jax.random.PRNGKey(0)
    ks = jax.random.split(key, 8)

    B, Cin, H, W = 2, 4, 16, 16
    x = jax.random.normal(ks[0], (B, Cin, H, W), jnp.float32)

    def make_params(cin, cout, er, k0):
        hid = cin * er
        kk = jax.random.split(k0, 9)
        p = {}
        if er != 1:
            p["w_exp"] = 0.4 * jax.random.normal(kk[0], (hid, cin, 1, 1), jnp.float32)
            p["gamma1"] = 1.0 + 0.1 * jax.random.normal(kk[1], (hid,), jnp.float32)
            p["beta1"] = 0.1 * jax.random.normal(kk[2], (hid,), jnp.float32)
        p["w_dw"] = 0.4 * jax.random.normal(kk[3], (hid, 1, 3, 3), jnp.float32)
        p["gamma2"] = 1.0 + 0.1 * jax.random.normal(kk[4], (hid,), jnp.float32)
        p["beta2"] = 0.1 * jax.random.normal(kk[5], (hid,), jnp.float32)
        p["w_proj"] = 0.4 * jax.random.normal(kk[6], (cout, hid, 1, 1), jnp.float32)
        p["gamma3"] = 1.0 + 0.1 * jax.random.normal(kk[7], (cout,), jnp.float32)
        p["beta3"] = 0.1 * jax.random.normal(kk[8], (cout,), jnp.float32)
        return p

    # 1) expand_ratio=2, residual shortcut, f32 intermediates, spatial tiling (nS=2)
    p1 = make_params(Cin, Cin, 2, ks[1])
    out1 = jax.block_until_ready(
        inverted_residual_forward(x, p1, stride=1, expand_ratio=2,
                                  act_dtype=jnp.float32, s_tile_target=128))
    ref1 = inverted_residual_reference(x, p1, stride=1, expand_ratio=2)
    assert out1.shape == (B, Cin, H, W)
    assert jnp.allclose(out1, ref1, rtol=1e-3, atol=1e-3), "mismatch (er=2, f32)"

    # 2) expand_ratio=1 (no expansion stage), shortcut, f32 intermediates
    p2 = make_params(Cin, Cin, 1, ks[2])
    out2 = jax.block_until_ready(
        inverted_residual_forward(x, p2, stride=1, expand_ratio=1,
                                  act_dtype=jnp.float32))
    ref2 = inverted_residual_reference(x, p2, stride=1, expand_ratio=1)
    assert jnp.allclose(out2, ref2, rtol=1e-3, atol=1e-3), "mismatch (er=1, f32)"

    # 3) expand_ratio=4, no shortcut (cin != cout), channel + spatial tiling,
    #    projection 1x1 exercises the MXU path (K = 16)
    Cout3 = 8
    p3 = make_params(Cin, Cout3, 4, ks[3])
    out3 = jax.block_until_ready(
        inverted_residual_forward(x, p3, stride=1, expand_ratio=4,
                                  act_dtype=jnp.float32,
                                  s_tile_target=128, c_tile_target=8))
    ref3 = inverted_residual_reference(x, p3, stride=1, expand_ratio=4)
    assert out3.shape == (B, Cout3, H, W)
    assert jnp.allclose(out3, ref3, rtol=1e-3, atol=1e-3), "mismatch (er=4, f32)"

    # 4) default bf16 inter-stage activations (halves HBM traffic of the chain);
    #    tolerance reflects three bf16 round-trips between stages.
    out4 = jax.block_until_ready(
        inverted_residual_forward(x, p1, stride=1, expand_ratio=2))
    assert out4.shape == (B, Cin, H, W)
    assert jnp.allclose(out4, ref1, rtol=5e-2, atol=1.5e-1), "mismatch (er=2, bf16)"

    print("KERNEL_OK")
</pallas_src>

<mosaic_0001>
module attributes {stable_mosaic.version = 11 : i64} {
  func.func @_expand_kernel(%arg0: i32, %arg1: i32, %arg2: memref<1x4x128xf32, #tpu.memory_space<vmem>>, %arg3: memref<8x4xf32, #tpu.memory_space<vmem>>, %arg4: memref<1x8x128xf32, #tpu.memory_space<vmem>>, %arg5: memref<1x1x8x1xf32, #tpu.memory_space<vmem>>, %arg6: memref<1x1x8x1xf32, #tpu.memory_space<vmem>>) attributes {dimension_semantics = [#tpu.dimension_semantics<parallel>, #tpu.dimension_semantics<parallel>], iteration_bounds = array<i64: 2, 2>, scalar_prefetch = 0 : i64, scratch_operands = 0 : i64, tpu.core_type = #tpu.core_type<tc>, window_params = [{transform_indices = @transform_0, window_bounds = array<i64: 1, 4, 128>}, {pipeline_mode = #tpu.pipeline_mode<synchronous>, transform_indices = @transform_1, window_bounds = array<i64: 8, 4>}, {transform_indices = @transform_2, window_bounds = array<i64: 1, 8, 128>}, {transform_indices = @transform_3, window_bounds = array<i64: 1, 1, 8, 1>}, {transform_indices = @transform_4, window_bounds = array<i64: 1, 1, 8, 1>}]} {
    %c0 = arith.constant 0 : index
    %c0_0 = arith.constant 0 : index
    %c0_1 = arith.constant 0 : index
    %0 = vector.load %arg2[%c0, %c0_0, %c0_1] : memref<1x4x128xf32, #tpu.memory_space<vmem>>, vector<1x4x128xf32>
    %1 = vector.shape_cast %0 : vector<1x4x128xf32> to vector<4x128xf32>
    %c0_2 = arith.constant 0 : index
    %c0_3 = arith.constant 0 : index
    %2 = vector.load %arg3[%c0_2, %c0_3] : memref<8x4xf32, #tpu.memory_space<vmem>>, vector<8x4xf32>
    %3 = vector.extract_strided_slice %2 {offsets = [0, 0], sizes = [8, 1], strides = [1, 1]} : vector<8x4xf32> to vector<8x1xf32>
    %4 = vector.extract_strided_slice %1 {offsets = [0, 0], sizes = [1, 128], strides = [1, 1]} : vector<4x128xf32> to vector<1x128xf32>
    %5 = vector.broadcast %3 : vector<8x1xf32> to vector<8x128xf32>
    %6 = vector.broadcast %4 : vector<1x128xf32> to vector<8x128xf32>
    %7 = arith.mulf %5, %6 : vector<8x128xf32>
    %8 = vector.extract_strided_slice %2 {offsets = [0, 1], sizes = [8, 1], strides = [1, 1]} : vector<8x4xf32> to vector<8x1xf32>
    %9 = vector.extract_strided_slice %1 {offsets = [1, 0], sizes = [1, 128], strides = [1, 1]} : vector<4x128xf32> to vector<1x128xf32>
    %10 = vector.broadcast %8 : vector<8x1xf32> to vector<8x128xf32>
    %11 = vector.broadcast %9 : vector<1x128xf32> to vector<8x128xf32>
    %12 = arith.mulf %10, %11 : vector<8x128xf32>
    %13 = arith.addf %7, %12 : vector<8x128xf32>
    %14 = vector.extract_strided_slice %2 {offsets = [0, 2], sizes = [8, 1], strides = [1, 1]} : vector<8x4xf32> to vector<8x1xf32>
    %15 = vector.extract_strided_slice %1 {offsets = [2, 0], sizes = [1, 128], strides = [1, 1]} : vector<4x128xf32> to vector<1x128xf32>
    %16 = vector.broadcast %14 : vector<8x1xf32> to vector<8x128xf32>
    %17 = vector.broadcast %15 : vector<1x128xf32> to vector<8x128xf32>
    %18 = arith.mulf %16, %17 : vector<8x128xf32>
    %19 = arith.addf %13, %18 : vector<8x128xf32>
    %20 = vector.extract_strided_slice %2 {offsets = [0, 3], sizes = [8, 1], strides = [1, 1]} : vector<8x4xf32> to vector<8x1xf32>
    %21 = vector.extract_strided_slice %1 {offsets = [3, 0], sizes = [1, 128], strides = [1, 1]} : vector<4x128xf32> to vector<1x128xf32>
    %22 = vector.broadcast %20 : vector<8x1xf32> to vector<8x128xf32>
    %23 = vector.broadcast %21 : vector<1x128xf32> to vector<8x128xf32>
    %24 = arith.mulf %22, %23 : vector<8x128xf32>
    %25 = arith.addf %19, %24 : vector<8x128xf32>
    %c0_4 = arith.constant 0 : index
    %c0_5 = arith.constant 0 : index
    %c0_6 = arith.constant 0 : index
    %26 = vector.load %arg4[%c0_4, %c0_5, %c0_6] : memref<1x8x128xf32, #tpu.memory_space<vmem>>, vector<1x8x128xf32>
    %27 = vector.shape_cast %26 : vector<1x8x128xf32> to vector<8x128xf32>
    %28 = vector.shape_cast %25 : vector<8x128xf32> to vector<1x8x128xf32>
    tpu.vector_store %arg4[%c0_4, %c0_5, %c0_6], %28 {strides = array<i32>} : memref<1x8x128xf32, #tpu.memory_space<vmem>>, vector<1x8x128xf32>,
    %cst = arith.constant dense<0.000000e+00> : vector<8xf32>
    %29 = vector.multi_reduction <add>, %25, %cst [1] : vector<8x128xf32> to vector<8xf32>
    %30 = vector.shape_cast %29 : vector<8xf32> to vector<8x1xf32>
    %31 = arith.mulf %25, %25 : vector<8x128xf32>
    %cst_7 = arith.constant dense<0.000000e+00> : vector<8xf32>
    %32 = vector.multi_reduction <add>, %31, %cst_7 [1] : vector<8x128xf32> to vector<8xf32>
    %33 = vector.shape_cast %32 : vector<8xf32> to vector<8x1xf32>
    %c0_8 = arith.constant 0 : index
    %c0_9 = arith.constant 0 : index
    %c0_10 = arith.constant 0 : index
    %c0_11 = arith.constant 0 : index
    %34 = vector.load %arg5[%c0_8, %c0_9, %c0_10, %c0_11] : memref<1x1x8x1xf32, #tpu.memory_space<vmem>>, vector<1x1x8x1xf32>
    %35 = vector.shape_cast %34 : vector<1x1x8x1xf32> to vector<8x1xf32>
    %36 = vector.shape_cast %30 : vector<8x1xf32> to vector<1x1x8x1xf32>
    tpu.vector_store %arg5[%c0_8, %c0_9, %c0_10, %c0_11], %36 {strides = array<i32>} : memref<1x1x8x1xf32, #tpu.memory_space<vmem>>, vector<1x1x8x1xf32>,
    %c0_12 = arith.constant 0 : index
    %c0_13 = arith.constant 0 : index
    %c0_14 = arith.constant 0 : index
    %c0_15 = arith.constant 0 : index
    %37 = vector.load %arg6[%c0_12, %c0_13, %c0_14, %c0_15] : memref<1x1x8x1xf32, #tpu.memory_space<vmem>>, vector<1x1x8x1xf32>
    %38 = vector.shape_cast %37 : vector<1x1x8x1xf32> to vector<8x1xf32>
    %39 = vector.shape_cast %33 : vector<8x1xf32> to vector<1x1x8x1xf32>
    tpu.vector_store %arg6[%c0_12, %c0_13, %c0_14, %c0_15], %39 {strides = array<i32>} : memref<1x1x8x1xf32, #tpu.memory_space<vmem>>, vector<1x1x8x1xf32>,
    return
  }
  func.func @transform_0(%arg0: i32, %arg1: i32) -> (i32, i32, i32) {
    %c0_i32 = arith.constant 0 : i32
    %c0_i32_0 = arith.constant 0 : i32
    return %arg0, %c0_i32, %arg1 : i32, i32, i32
  }
  func.func @transform_1(%arg0: i32, %arg1: i32) -> (i32, i32) {
    %c0_i32 = arith.constant 0 : i32
    %c0_i32_0 = arith.constant 0 : i32
    %c0_i32_1 = arith.constant 0 : i32
    return %c0_i32, %c0_i32_0 : i32, i32
  }
  func.func @transform_2(%arg0: i32, %arg1: i32) -> (i32, i32, i32) {
    %c0_i32 = arith.constant 0 : i32
    %c0_i32_0 = arith.constant 0 : i32
    return %arg0, %c0_i32, %arg1 : i32, i32, i32
  }
  func.func @transform_3(%arg0: i32, %arg1: i32) -> (i32, i32, i32, i32) {
    %c0_i32 = arith.constant 0 : i32
    %c0_i32_0 = arith.constant 0 : i32
    %c0_i32_1 = arith.constant 0 : i32
    return %arg0, %arg1, %c0_i32, %c0_i32_0 : i32, i32, i32, i32
  }
  func.func @transform_4(%arg0: i32, %arg1: i32) -> (i32, i32, i32, i32) {
    %c0_i32 = arith.constant 0 : i32
    %c0_i32_0 = arith.constant 0 : i32
    %c0_i32_1 = arith.constant 0 : i32
    return %arg0, %arg1, %c0_i32, %c0_i32_0 : i32, i32, i32, i32
  }
}

</mosaic_0001>

<llo_original>
// kernel: tpu_custom_call.1
$region0: #{tpu_custom_call.1}
  #allocation0 [shape = 'u32[]', space=smem, size = 0x4, offset = 0x4, fixed_abs, tag = 'smem constant byte address 0x4 - core index']
  #allocation1 [shape = 'u32[144,128]{1,0:T(1,128)}', space=vmem, size = 0x12000, scoped, tag = 'internal scratch']
  %s0 = inlined_call_operand.hbm [shape: f32[2,4,256], index: 0, kind: input, shape index: {}]
  %s1 = inlined_call_operand.vmem [shape: f32[8,4], index: 1, kind: input, shape index: {}]
  %s2 = inlined_call_operand.hbm [shape: f32[2,8,256], index: 2, kind: output, shape index: {0}]
  %s3 = inlined_call_operand.vmem [shape: f32[2,2,8,1], index: 3, kind: output, shape index: {1}]
  %s4 = inlined_call_operand.vmem [shape: f32[2,2,8,1], index: 4, kind: output, shape index: {2}]
  %5 = xla_tuple %s2, %s3, %s4
  %s6 = sld [smem:[#allocation0]]
  $region61: #{tpu_custom_call.1} parent=0
    _
  %s8 = ssub.s32 1, %s6
  %s9 = scalar_select 0, %s8, %s6
  $region1: #{tpu_custom_call.1} parent=0
    #allocation2 [shape = 'u8[4096]{0}', space=vmem, size = 0x1000, scoped, tag = 'input window, operand 0']
    #allocation3 [shape = 's32[2]{0}', space=sflag, size = 0x8, scoped, tag = 'scoped memory for tpu_custom_call.1']
    #allocation4 [shape = 's32[2]{0}', space=sflag, size = 0x8, scoped, tag = 'scoped memory for tpu_custom_call.1']
    #allocation5 [shape = 'u8[8192]{0}', space=vmem, size = 0x2000, scoped, tag = 'output window, operand 0']
    %10 = vsyncpa [#allocation3], 0
    %s11 = scalar_lea.sflag [#allocation3], 1
    %12 = vsyncpa %s11, 0
    %13 = vsyncpa [#allocation4], 0
    %s14 = scalar_lea.sflag [#allocation4], 1
    %15 = vsyncpa %s14, 0
    loop: start=0, step=1, limit=6
    $region2: #{tpu_custom_call.1} parent=1 // loop_pre_header
      _
    $region3: #{tpu_custom_call.1} parent=1 // loop_header
      %s17 = sphi 0, %s21
      %p18 = scmp.ge.s32.totalorder %s17, 6
      %s24 = sphi 0, %s36
      %s25 = sphi 0, %s32
      %s26 = sphi 0, %s24
      %s27 = sphi 0, %s25
      %s28 = sphi 0, %s26
      %s29 = sphi 0, %s27
      %s41 = sphi 0, %s43
      %s44 = sphi 0, %s41
      %s45 = sphi 0, %s44
      %s61 = sphi 0, %s45
      %s65 = sphi 0, %s65
      %s67 = sphi 0, %s65
      %s68 = sphi 0, %s67
      %s82 = sphi 0, %s68
      %s90 = sphi 0, %s92
      %s93 = sphi 0, %s90
      %s94 = sphi 0, %s93
      %s110 = sphi 0, %s94
      %s118 = sphi 0, %s120
      %s121 = sphi 0, %s118
      %s122 = sphi 0, %s121
      %s138 = sphi 0, %s122
      %s146 = sphi 0, %s148
      %s149 = sphi 0, %s146
      %s150 = sphi 0, %s149
      %s166 = sphi 0, %s150
    $region4: #{tpu_custom_call.1} parent=1 // loop_header_branch
      %20 = sbr.rel (%p18) target = $region8
    $region5: #{tpu_custom_call.1} parent=1 // loop_body
      %s22 = ssub.s32 %s17, 1
      %s23 = ssub.s32 %s17, 2
      %s30 = sadd.s32 1, %s25
      %p31 = scmp.ge.s32.totalorder %s30, 2
      %s32 = scalar_select %p31, 0, %s30
      %s33 = sadd.s32 1, %s24
      %s34 = scalar_select %p31, %s33, %s24
      %p35 = scmp.ge.s32.totalorder %s34, 2
      %s36 = scalar_select %p35, 0, %s34
      %s37 = ssub.s32 %s24, %s36
      %s38 = ssub.s32 %s25, %s32
      %s39 = sor.u32 %s37, %s38
      %p40 = scmp.eq.s32.totalorder %s39, 0
      %s42 = sadd.s32 %s41, 1
      %s43 = scalar_select %p40, %s41, %s42
      %p46 = pneg %p40
      %p47 = scmp.eq.s32.totalorder %s17, 3
      %p48 = por %p46, %p47
      %p49 = scmp.ne.s32.totalorder %s41, %s44
      %p50 = scmp.eq.s32.totalorder %s17, 0
      %p51 = por %p49, %p50
      %p52 = scmp.ne.s32.totalorder %s41, %s44
      %p53 = scmp.eq.s32.totalorder %s22, 3
      %p54 = por %p52, %p53
      %p55 = scmp.ne.s32.totalorder %s44, %s45
      %p56 = scmp.eq.s32.totalorder %s22, 0
      %p57 = por %p55, %p56
      %p58 = scmp.ne.s32.totalorder %s44, %s45
      %p59 = scmp.eq.s32.totalorder %s23, 3
      %p60 = por %p58, %p59
      %p62 = scmp.ne.s32.totalorder %s45, %s61
      %p63 = scmp.eq.s32.totalorder %s23, 0
      %p64 = por %p62, %p63
      %s66 = sadd.s32 %s65, 1
      %p69 = scmp.eq.s32.totalorder %s17, 3
      %p70 = scmp.ne.s32.totalorder %s65, %s67
      %p71 = scmp.eq.s32.totalorder %s17, 0
      %p72 = por %p70, %p71
      %p73 = scmp.ne.s32.totalorder %s65, %s67
      %p74 = scmp.eq.s32.totalorder %s22, 3
      %p75 = por %p73, %p74
      %p76 = scmp.ne.s32.totalorder %s67, %s68
      %p77 = scmp.eq.s32.totalorder %s22, 0
      %p78 = por %p76, %p77
      %p79 = scmp.ne.s32.totalorder %s67, %s68
      %p80 = scmp.eq.s32.totalorder %s23, 3
      %p81 = por %p79, %p80
      %p83 = scmp.ne.s32.totalorder %s68, %s82
      %p84 = scmp.eq.s32.totalorder %s23, 0
      %p85 = por %p83, %p84
      %s86 = ssub.s32 %s24, %s36
      %s87 = ssub.s32 %s25, %s32
      %s88 = sor.u32 %s86, %s87
      %p89 = scmp.eq.s32.totalorder %s88, 0
      %s91 = sadd.s32 %s90, 1
      %s92 = scalar_select %p89, %s90, %s91
      %p95 = pneg %p89
      %p96 = scmp.eq.s32.totalorder %s17, 3
      %p97 = por %p95, %p96
      %p98 = scmp.ne.s32.totalorder %s90, %s93
      %p99 = scmp.eq.s32.totalorder %s17, 0
      %p100 = por %p98, %p99
      %p101 = scmp.ne.s32.totalorder %s90, %s93
      %p102 = scmp.eq.s32.totalorder %s22, 3
      %p103 = por %p101, %p102
      %p104 = scmp.ne.s32.totalorder %s93, %s94
      %p105 = scmp.eq.s32.totalorder %s22, 0
      %p106 = por %p104, %p105
      %p107 = scmp.ne.s32.totalorder %s93, %s94
      %p108 = scmp.eq.s32.totalorder %s23, 3
      %p109 = por %p107, %p108
      %p111 = scmp.ne.s32.totalorder %s94, %s110
      %p112 = scmp.eq.s32.totalorder %s23, 0
      %p113 = por %p111, %p112
      %s114 = ssub.s32 %s24, %s36
      %s115 = ssub.s32 %s25, %s32
      %s116 = sor.u32 %s114, %s115
      %p117 = scmp.eq.s32.totalorder %s116, 0
      %s119 = sadd.s32 %s118, 1
      %s120 = scalar_select %p117, %s118, %s119
      %p123 = pneg %p117
      %p124 = scmp.eq.s32.totalorder %s17, 3
      %p125 = por %p123, %p124
      %p126 = scmp.ne.s32.totalorder %s118, %s121
      %p127 = scmp.eq.s32.totalorder %s17, 0
      %p128 = por %p126, %p127
      %p129 = scmp.ne.s32.totalorder %s118, %s121
      %p130 = scmp.eq.s32.totalorder %s22, 3
      %p131 = por %p129, %p130
      %p132 = scmp.ne.s32.totalorder %s121, %s122
      %p133 = scmp.eq.s32.totalorder %s22, 0
      %p134 = por %p132, %p133
      %p135 = scmp.ne.s32.totalorder %s121, %s122
      %p136 = scmp.eq.s32.totalorder %s23, 3
      %p137 = por %p135, %p136
      %p139 = scmp.ne.s32.totalorder %s122, %s138
      %p140 = scmp.eq.s32.totalorder %s23, 0
      %p141 = por %p139, %p140
      %s142 = ssub.s32 %s24, %s36
      %s143 = ssub.s32 %s25, %s32
      %s144 = sor.u32 %s142, %s143
      %p145 = scmp.eq.s32.totalorder %s144, 0
      %s147 = sadd.s32 %s146, 1
      %s148 = scalar_select %p145, %s146, %s147
      %p151 = pneg %p145
      %p152 = scmp.eq.s32.totalorder %s17, 3
      %p153 = por %p151, %p152
      %p154 = scmp.ne.s32.totalorder %s146, %s149
      %p155 = scmp.eq.s32.totalorder %s17, 0
      %p156 = por %p154, %p155
      %p157 = scmp.ne.s32.totalorder %s146, %s149
      %p158 = scmp.eq.s32.totalorder %s22, 3
      %p159 = por %p157, %p158
      %p160 = scmp.ne.s32.totalorder %s149, %s150
      %p161 = scmp.eq.s32.totalorder %s22, 0
      %p162 = por %p160, %p161
      %p163 = scmp.ne.s32.totalorder %s149, %s150
      %p164 = scmp.eq.s32.totalorder %s23, 3
      %p165 = por %p163, %p164
      %p167 = scmp.ne.s32.totalorder %s150, %s166
      %p168 = scmp.eq.s32.totalorder %s23, 0
      %p169 = por %p167, %p168
      %p170 = scmp.le.s32.totalorder 1, %s17
      %p171 = scmp.lt.s32.totalorder %s17, 5
      %p172 = pnand %p170, %p171
      %p173 = pneg %p172
      // Predicated region
      $region9: #{tpu_custom_call.1} parent=5 // pred_check
        _
      $region10: #{tpu_custom_call.1} parent=5 // pred_check_branch
        %175 = sbr.rel (%p172) target = $region12
      $region11: #{tpu_custom_call.1} parent=5 // pred_region
        %s176 = ssub.s32 %s17, 1
        // Predicated region
        $region13: #{tpu_custom_call.1} parent=11 // pred_check
          %p177 = pneg %p78
        $region14: #{tpu_custom_call.1} parent=11 // pred_check_branch
          %179 = sbr.rel (%p177) target = $region16
        $region15: #{tpu_custom_call.1} parent=11 // pred_region
          _
        $region16: #{tpu_custom_call.1} parent=11 // pred_fallthru
          _
      $region12: #{tpu_custom_call.1} parent=5 // pred_fallthru
        _
      %p180 = scmp.lt.s32.totalorder %s17, 4
      // Predicated region
      $region17: #{tpu_custom_call.1} parent=5 // pred_check
        %p181 = pneg %p180
      $region18: #{tpu_custom_call.1} parent=5 // pred_check_branch
        %183 = sbr.rel (%p181) target = $region20
      $region19: #{tpu_custom_call.1} parent=5 // pred_region
        // Predicated region
        $region21: #{tpu_custom_call.1} parent=19 // pred_check
          %p184 = pneg %p51
        $region22: #{tpu_custom_call.1} parent=19 // pred_check_branch
          %186 = sbr.rel (%p184) target = $region24
        $region23: #{tpu_custom_call.1} parent=19 // pred_region
          %s187 = sand.u32 %s41, 1
          %s188 = scalar_lea.sflag [#allocation3], %s187
          %s189 = sand.u32 %s41, 1
          %s190 = smul.addr %s189, 4
          %s191 = scalar_lea.vmem [#allocation2], %s190
          %s193 = ssub.s32 64, 64
          %194 = vsyncadd %s188, %s193
          %s195 = smul.addr %s24, 2
          %s196 = sadd.s32 %s25, %s195
          %s197 = smul.addr %s196, 64
          %s198 = scalar_lea.hbm %s0, %s197
          %s200 = sshll.u32 %s191, 4
          %s201 = int_to_ptr.vmem [resolvable:$true] %s200
          %203 = dma.hbm_to_vmem [thread:$0]  %s198, 64, %s201, %s188
        $region24: #{tpu_custom_call.1} parent=19 // pred_fallthru
          _
      $region20: #{tpu_custom_call.1} parent=5 // pred_fallthru
        _
      %p204 = scmp.le.s32.totalorder 1, %s17
      %p205 = scmp.lt.s32.totalorder %s17, 5
      %p206 = pnand %p204, %p205
      %p207 = pneg %p206
      // Predicated region
      $region25: #{tpu_custom_call.1} parent=5 // pred_check
        _
      $region26: #{tpu_custom_call.1} parent=5 // pred_check_branch
        %209 = sbr.rel (%p206) target = $region28
      $region27: #{tpu_custom_call.1} parent=5 // pred_region
        %s210 = ssub.s32 %s17, 1
        %s211 = sand.u32 %s44, 1
        %s212 = scalar_lea.sflag [#allocation3], %s211
        %s213 = sand.u32 %s44, 1
        %s214 = smul.addr %s213, 4
        %s215 = scalar_lea.vmem [#allocation2], %s214
        // Predicated region
        $region29: #{tpu_custom_call.1} parent=27 // pred_check
          %p216 = pneg %p57
        $region30: #{tpu_custom_call.1} parent=27 // pred_check_branch
          %218 = sbr.rel (%p216) target = $region32
        $region31: #{tpu_custom_call.1} parent=27 // pred_region
          %219 = dma.done %s212, 64
        $region32: #{tpu_custom_call.1} parent=27 // pred_fallthru
          _
        %s220 = sand.u32 %s44, 1
        %s221 = scalar_lea.sflag [#allocation3], %s220
        %s222 = sand.u32 %s44, 1
        %s223 = smul.addr %s222, 4
        %s224 = scalar_lea.vmem [#allocation2], %s223
        %p225 = pneg %p57
        %p226 = pneg %p54
        %p227 = pneg %p78
        %p228 = pneg %p75
        %p229 = pneg %p106
        %p230 = pneg %p103
        %s231 = sand.u32 %s93, 1
        %s232 = scalar_lea.sflag [#allocation4], %s231
        %s233 = sand.u32 %s93, 1
        %s234 = smul.addr %s233, 8
        %s235 = scalar_lea.vmem [#allocation5], %s234
        %p236 = pneg %p134
        %p237 = pneg %p131
        %p238 = scmp.lt.s32.totalorder %s26, 1
        %s239 = scalar_select %p238, %s26, 1
        %p240 = scmp.lt.s32.totalorder %s27, 1
        %s241 = scalar_select %p240, %s27, 1
        %s242 = smul.addr %s239, 2
        %s243 = sadd.s32 %s241, %s242
        %s244 = smul.addr %s243, 8
        %s245 = scalar_lea.vmem %s3, %s244
        %p246 = pneg %p162
        %p247 = pneg %p159
        %p248 = scmp.lt.s32.totalorder %s26, 1
        %s249 = scalar_select %p248, %s26, 1
        %p250 = scmp.lt.s32.totalorder %s27, 1
        %s251 = scalar_select %p250, %s27, 1
        %s252 = smul.addr %s249, 2
        %s253 = sadd.s32 %s251, %s252
        %s254 = smul.addr %s253, 8
        %s255 = scalar_lea.vmem %s4, %s254
        %p256 = scmp.lt.s32.totalorder %s26, 1
        %s257 = scalar_select %p256, %s26, 1
        %p258 = scmp.lt.s32.totalorder %s27, 1
        %s259 = scalar_select %p258, %s27, 1
        %s260 = smul.addr %s257, 2
        %s261 = sadd.s32 %s259, %s260
        %s262 = smul.addr %s261, 8
        %s263 = scalar_lea.vmem %s3, %s262
        %p264 = scmp.lt.s32.totalorder %s26, 1
        %s265 = scalar_select %p264, %s26, 1
        %p266 = scmp.lt.s32.totalorder %s27, 1
        %s267 = scalar_select %p266, %s27, 1
        %s268 = smul.addr %s265, 2
        %s269 = sadd.s32 %s267, %s268
        %s270 = smul.addr %s269, 8
        %s271 = scalar_lea.vmem %s4, %s270
        %v272 = vld [vmem:[%s215] sm:$0xf]
        %v273 = vld [vmem:[%s1] sm:$0xff]
        %275 = vset.pattern.permute.xlu0 0
        %276 = vperm.xlu0 %275, %v273
        %v277 = vpop.permute.xlu0 %276
        %v279 = vlaneseq
        %v280 = vshrl.u32 %v279, 7
        %v281 = vsub.s32 0, %v280
        %v282 = vrot.slane %v272, %v281
        %v283 = vmul.f32 %v277, %v282
        %284 = vset.pattern.permute.xlu0 1
        %285 = vperm.xlu0 %284, %v273
        %v286 = vpop.permute.xlu0 %285
        %v288 = vlaneseq
        %v289 = vshrl.u32 %v288, 7
        %v290 = vsub.s32 1, %v289
        %v291 = vrot.slane %v272, %v290
        %v292 = vmul.f32 %v286, %v291
        %v293 = vadd.f32 %v283, %v292
        %294 = vset.pattern.permute.xlu0 2
        %295 = vperm.xlu0 %294, %v273
        %v296 = vpop.permute.xlu0 %295
        %v298 = vlaneseq
        %v299 = vshrl.u32 %v298, 7
        %v300 = vsub.s32 2, %v299
        %v301 = vrot.slane %v272, %v300
        %v302 = vmul.f32 %v296, %v301
        %v303 = vadd.f32 %v293, %v302
        %304 = vset.pattern.permute.xlu0 3
        %305 = vperm.xlu0 %304, %v273
        %v306 = vpop.permute.xlu0 %305
        %v308 = vlaneseq
        %v309 = vshrl.u32 %v308, 7
        %v310 = vsub.s32 3, %v309
        %v311 = vrot.slane %v272, %v310
        %v312 = vmul.f32 %v306, %v311
        %v313 = vadd.f32 %v303, %v312
        %314 = vst [vmem:[%s235] sm:$0xff] %v313
        %315 = vadd.xlane.f32.xlu0 %v313
        %v316 = vpop.xlane.xlu0 %315
        %v317 = vmul.f32 %v313, %v313
        %318 = vadd.xlane.f32.xlu0 %v317
        %v319 = vpop.xlane.xlu0 %318
        %vm320 = vcmask 7168
        %321 = vst.msk [vmem:[%s263] sm:$0xff] %vm320, %v316
        %322 = vst.msk [vmem:[%s271] sm:$0xff] %vm320, %v319
        %s323 = sand.u32 %s93, 1
        %s324 = scalar_lea.sflag [#allocation4], %s323
        %s325 = sand.u32 %s93, 1
        %s326 = smul.addr %s325, 8
        %s327 = scalar_lea.vmem [#allocation5], %s326
        %p328 = scmp.lt.s32.totalorder %s26, 1
        %s329 = scalar_select %p328, %s26, 1
        %p330 = scmp.lt.s32.totalorder %s27, 1
        %s331 = scalar_select %p330, %s27, 1
        %s332 = smul.addr %s329, 2
        %s333 = sadd.s32 %s331, %s332
        %s334 = smul.addr %s333, 8
        %s335 = scalar_lea.vmem %s3, %s334
        %p336 = scmp.lt.s32.totalorder %s26, 1
        %s337 = scalar_select %p336, %s26, 1
        %p338 = scmp.lt.s32.totalorder %s27, 1
        %s339 = scalar_select %p338, %s27, 1
        %s340 = smul.addr %s337, 2
        %s341 = sadd.s32 %s339, %s340
        %s342 = smul.addr %s341, 8
        %s343 = scalar_lea.vmem %s4, %s342
        // Predicated region
        $region33: #{tpu_custom_call.1} parent=27 // pred_check
          %p344 = pneg %p103
        $region34: #{tpu_custom_call.1} parent=27 // pred_check_branch
          %346 = sbr.rel (%p344) target = $region36
        $region35: #{tpu_custom_call.1} parent=27 // pred_region
          %s348 = ssub.s32 128, 128
          %349 = vsyncadd %s324, %s348
          %s350 = smul.addr %s26, 2
          %s351 = sadd.s32 %s27, %s350
          %s352 = smul.addr %s351, 128
          %s353 = scalar_lea.hbm %s2, %s352
          %s355 = sshll.u32 %s327, 4
          %s356 = int_to_ptr.vmem [resolvable:$true] %s355
          %358 = dma.vmem_to_hbm [thread:$0]  %s356, 128, %s353, %s324
        $region36: #{tpu_custom_call.1} parent=27 // pred_fallthru
          _
        // Predicated region
        $region37: #{tpu_custom_call.1} parent=27 // pred_check
          %p359 = pneg %p131
        $region38: #{tpu_custom_call.1} parent=27 // pred_check_branch
          %361 = sbr.rel (%p359) target = $region40
        $region39: #{tpu_custom_call.1} parent=27 // pred_region
          _
        $region40: #{tpu_custom_call.1} parent=27 // pred_fallthru
          _
        // Predicated region
        $region41: #{tpu_custom_call.1} parent=27 // pred_check
          %p362 = pneg %p159
        $region42: #{tpu_custom_call.1} parent=27 // pred_check_branch
          %364 = sbr.rel (%p362) target = $region44
        $region43: #{tpu_custom_call.1} parent=27 // pred_region
          _
        $region44: #{tpu_custom_call.1} parent=27 // pred_fallthru
          _
      $region28: #{tpu_custom_call.1} parent=5 // pred_fallthru
        _
      %p365 = scmp.le.s32.totalorder 2, %s17
      // Predicated region
      $region45: #{tpu_custom_call.1} parent=5 // pred_check
        %p366 = pneg %p365
      $region46: #{tpu_custom_call.1} parent=5 // pred_check_branch
        %368 = sbr.rel (%p366) target = $region48
      $region47: #{tpu_custom_call.1} parent=5 // pred_region
        %s369 = ssub.s32 %s17, 2
        // Predicated region
        $region49: #{tpu_custom_call.1} parent=47 // pred_check
          %p370 = pneg %p109
        $region50: #{tpu_custom_call.1} parent=47 // pred_check_branch
          %372 = sbr.rel (%p370) target = $region52
        $region51: #{tpu_custom_call.1} parent=47 // pred_region
          %s373 = sand.u32 %s94, 1
          %s374 = scalar_lea.sflag [#allocation4], %s373
          %s375 = sand.u32 %s94, 1
          %s376 = smul.addr %s375, 8
          %s377 = scalar_lea.vmem [#allocation5], %s376
          %378 = dma.done %s374, 128
        $region52: #{tpu_custom_call.1} parent=47 // pred_fallthru
          _
        // Predicated region
        $region53: #{tpu_custom_call.1} parent=47 // pred_check
          %p379 = pneg %p137
        $region54: #{tpu_custom_call.1} parent=47 // pred_check_branch
          %381 = sbr.rel (%p379) target = $region56
        $region55: #{tpu_custom_call.1} parent=47 // pred_region
          %p382 = scmp.lt.s32.totalorder %s28, 1
          %s383 = scalar_select %p382, %s28, 1
          %p384 = scmp.lt.s32.totalorder %s29, 1
          %s385 = scalar_select %p384, %s29, 1
          %s386 = smul.addr %s383, 2
          %s387 = sadd.s32 %s385, %s386
          %s388 = smul.addr %s387, 8
          %s389 = scalar_lea.vmem %s3, %s388
        $region56: #{tpu_custom_call.1} parent=47 // pred_fallthru
          _
        // Predicated region
        $region57: #{tpu_custom_call.1} parent=47 // pred_check
          %p390 = pneg %p165
        $region58: #{tpu_custom_call.1} parent=47 // pred_check_branch
          %392 = sbr.rel (%p390) target = $region60
        $region59: #{tpu_custom_call.1} parent=47 // pred_region
          %p393 = scmp.lt.s32.totalorder %s28, 1
          %s394 = scalar_select %p393, %s28, 1
          %p395 = scmp.lt.s32.totalorder %s29, 1
          %s396 = scalar_select %p395, %s29, 1
          %s397 = smul.addr %s394, 2
          %s398 = sadd.s32 %s396, %s397
          %s399 = smul.addr %s398, 8
          %s400 = scalar_lea.vmem %s4, %s399
        $region60: #{tpu_custom_call.1} parent=47 // pred_fallthru
          _
      $region48: #{tpu_custom_call.1} parent=5 // pred_fallthru
        _
    $region6: #{tpu_custom_call.1} parent=1 // loop_footer
      %s21 = sadd.s32 1, %s17
    $region7: #{tpu_custom_call.1} parent=1 // loop_footer_branch
      %16 = sbr.rel target = $region3
    $region8: #{tpu_custom_call.1} parent=1 // loop_exit
      _
    %401 = vsyncpa [#allocation3], 1
    %s402 = scalar_lea.sflag [#allocation3], 1
    %403 = vsyncpa %s402, 1
    %404 = vsyncpa [#allocation4], 1
    %s405 = scalar_lea.sflag [#allocation4], 1
    %406 = vsyncpa %s405, 1

</llo_original>
